<compile_context>
chip_gen: v5e
topology: v5e:2x2
jax: 0.10.0
libtpu: 0.0.40
codegen_flags: <defaults>
</compile_context>

<pallas_src>
import functools

import jax
import jax.numpy as jnp
from jax.experimental import pallas as pl
from jax.experimental.pallas import tpu as pltpu


def _copy_kernel(x_ref, o_ref):
    # Input block already windowed to (R, L_out): pure copy.
    o_ref[...] = x_ref[...]


def _slice_kernel(x_ref, o_ref, *, l_out):
    # Input block is the full (R, L) slab; keep the first l_out lanes.
    o_ref[...] = x_ref[:, :l_out]


def chomp1d(x: jax.Array, chomp_size: int) -> jax.Array:
    """Pallas implementation of Chomp1d.forward for x of shape (N, C, L)."""
    n, c, l = x.shape
    assert 0 < chomp_size < l, "chomp_size must be in (0, L)"
    l_out = l - chomp_size

    rows = n * c
    x2 = x.reshape(rows, l)

    dtype_bytes = jnp.dtype(x.dtype).itemsize
    # Sub-32-bit dtypes pack along sublanes: keep row tiles a multiple of the
    # packed sublane count (8 for f32, 16 for bf16, 32 for int8).
    packing = max(1, 4 // dtype_bytes)
    sublane = 8 * packing

    # Row-tile size: target ~2 MiB per input buffer, rounded to the packed
    # sublane multiple, capped at the full row count (full-dim blocks are
    # always layout-legal even when not sublane-aligned).
    target_bytes = 2 * 1024 * 1024
    r = (target_bytes // max(1, l * dtype_bytes)) // sublane * sublane
    r = int(max(sublane, r))
    if r >= rows:
        r = rows
    grid = (pl.cdiv(rows, r),)

    # Window the chomp in the input BlockSpec when the window is lane-aligned
    # (block last dim must be a multiple of 128 or the full array dim).
    window_input = (l_out % 128 == 0)

    if window_input:
        kernel = _copy_kernel
        in_spec = pl.BlockSpec((r, l_out), lambda i: (i, 0))
        read_bytes = rows * l_out * dtype_bytes
    else:
        kernel = functools.partial(_slice_kernel, l_out=l_out)
        in_spec = pl.BlockSpec((r, l), lambda i: (i, 0))
        read_bytes = rows * l * dtype_bytes

    out_spec = pl.BlockSpec((r, l_out), lambda i: (i, 0))

    y2 = pl.pallas_call(
        kernel,
        out_shape=jax.ShapeDtypeStruct((rows, l_out), x.dtype),
        grid=grid,
        in_specs=[in_spec],
        out_specs=out_spec,
        compiler_params=pltpu.CompilerParams(
            dimension_semantics=("parallel",),
        ),
        cost_estimate=pl.CostEstimate(
            flops=0,
            transcendentals=0,
            bytes_accessed=read_bytes + rows * l_out * dtype_bytes,
        ),
    )(x2)

    return y2.reshape(n, c, l_out)


if __name__ == "__main__":
    key = jax.random.PRNGKey(0)
    k1, k2 = jax.random.split(key)

    # Case 1: small TCN-like shape, unaligned L_out (exercises slice path).
    N, C, L = 2, 4, 16
    chomp_size = 3
    x = jax.random.normal(k1, (N, C, L), dtype=jnp.float32)
    y = chomp1d(x, chomp_size)
    jax.block_until_ready(y)
    y_ref = x[:, :, :-chomp_size]
    assert y.shape == (N, C, L - chomp_size), y.shape
    assert jnp.array_equal(y, y_ref), "mismatch vs reference slice (unaligned)"

    # Case 2: lane-aligned L_out (exercises windowed pure-copy path).
    N2, C2, L2 = 2, 4, 256
    chomp2 = 128
    x2 = jax.random.normal(k2, (N2, C2, L2), dtype=jnp.float32)
    y2 = chomp1d(x2, chomp2)
    jax.block_until_ready(y2)
    y2_ref = x2[:, :, :-chomp2]
    assert y2.shape == (N2, C2, L2 - chomp2), y2.shape
    assert jnp.array_equal(y2, y2_ref), "mismatch vs reference slice (aligned)"

    print("KERNEL_OK")
</pallas_src>

<mosaic_0001>
module attributes {stable_mosaic.version = 11 : i64} {
  func.func @_slice_kernel(%arg0: i32, %arg1: memref<8x16xf32, #tpu.memory_space<vmem>>, %arg2: memref<8x13xf32, #tpu.memory_space<vmem>>) attributes {dimension_semantics = [#tpu.dimension_semantics<parallel>], iteration_bounds = array<i64: 1>, scalar_prefetch = 0 : i64, scratch_operands = 0 : i64, tpu.core_type = #tpu.core_type<tc>, window_params = [{transform_indices = @transform_0, window_bounds = array<i64: 8, 16>}, {transform_indices = @transform_1, window_bounds = array<i64: 8, 13>}]} {
    %c0 = arith.constant 0 : index
    %c0_0 = arith.constant 0 : index
    %0 = vector.load %arg1[%c0, %c0_0] : memref<8x16xf32, #tpu.memory_space<vmem>>, vector<8x13xf32>
    %c0_1 = arith.constant 0 : index
    %c0_2 = arith.constant 0 : index
    %1 = vector.load %arg2[%c0_1, %c0_2] : memref<8x13xf32, #tpu.memory_space<vmem>>, vector<8x13xf32>
    tpu.vector_store %arg2[%c0_1, %c0_2], %0 {strides = array<i32>} : memref<8x13xf32, #tpu.memory_space<vmem>>, vector<8x13xf32>,
    return
  }
  func.func @transform_0(%arg0: i32) -> (i32, i32) {
    %c0_i32 = arith.constant 0 : i32
    %c0_i32_0 = arith.constant 0 : i32
    return %arg0, %c0_i32 : i32, i32
  }
  func.func @transform_1(%arg0: i32) -> (i32, i32) {
    %c0_i32 = arith.constant 0 : i32
    %c0_i32_0 = arith.constant 0 : i32
    return %arg0, %c0_i32 : i32, i32
  }
}

</mosaic_0001>

<llo_original>
// kernel: tpu_custom_call.1
$region0: #{tpu_custom_call.1}
  #allocation0 [shape = 'u32[]', space=smem, size = 0x4, offset = 0x4, fixed_abs, tag = 'smem constant byte address 0x4 - core index']
  #allocation1 [shape = 'u32[72,128]{1,0:T(1,128)}', space=vmem, size = 0x9000, scoped, tag = 'internal scratch']
  %s0 = inlined_call_operand.hbm [shape: f32[8,16], index: 0, kind: input, shape index: {}]
  %s1 = inlined_call_operand.hbm [shape: f32[8,13], index: 1, kind: output, shape index: {}]
  %s2 = sld [smem:[#allocation0]]
  $region18: #{tpu_custom_call.1} parent=0
    _
  %s4 = ssub.s32 1, %s2
  %s5 = scalar_select 0, %s4, %s2
  $region1: #{tpu_custom_call.1} parent=0
    #allocation2 [shape = 'u8[4096]{0}', space=vmem, size = 0x1000, scoped, tag = 'input window, operand 0, single buffered']
    #allocation3 [shape = 's32[1]{0}', space=sflag, size = 0x4, scoped, tag = 'scoped memory for tpu_custom_call.1']
    #allocation4 [shape = 's32[1]{0}', space=sflag, size = 0x4, scoped, tag = 'scoped memory for tpu_custom_call.1']
    #allocation5 [shape = 'u8[4096]{0}', space=vmem, size = 0x1000, scoped, tag = 'output window, operand 0, single buffered']
    %6 = vsyncpa [#allocation3], 0
    %7 = vsyncpa [#allocation4], 0
    // Predicated region
    $region2: #{tpu_custom_call.1} parent=1 // pred_check
      _
    $region3: #{tpu_custom_call.1} parent=1 // pred_check_branch
      %9 = sbr.rel (0) target = $region5
    $region4: #{tpu_custom_call.1} parent=1 // pred_region
      %11 = vsyncadd [#allocation3], 0
      %s13 = sshll.u32 %s0, 4
      %s14 = int_to_ptr.hbm [resolvable:$true] %s13
      %s15 = sshll.u32 [#allocation2], 4
      %s16 = int_to_ptr.vmem [resolvable:$true] %s15
      %18 = dma.hbm_to_vmem [thread:$0]  %s14, 128, %s16, [#allocation3]
    $region5: #{tpu_custom_call.1} parent=1 // pred_fallthru
      _
    // Predicated region
    $region6: #{tpu_custom_call.1} parent=1 // pred_check
      _
    $region7: #{tpu_custom_call.1} parent=1 // pred_check_branch
      %20 = sbr.rel (0) target = $region9
    $region8: #{tpu_custom_call.1} parent=1 // pred_region
      %22 = dma.done [#allocation3], 128
    $region9: #{tpu_custom_call.1} parent=1 // pred_fallthru
      _
    %v23 = vld [vmem:[#allocation2] sm:$0xff]
    %vm24 = vcmask 105472
    %25 = vst.msk [vmem:[#allocation5] sm:$0xff] %vm24, %v23
    // Predicated region
    $region10: #{tpu_custom_call.1} parent=1 // pred_check
      _
    $region11: #{tpu_custom_call.1} parent=1 // pred_check_branch
      %27 = sbr.rel (0) target = $region13
    $region12: #{tpu_custom_call.1} parent=1 // pred_region
      %29 = vsyncadd [#allocation4], 0
      %s31 = sshll.u32 [#allocation5], 4
      %s32 = int_to_ptr.vmem [resolvable:$true] %s31
      %s33 = sshll.u32 %s1, 4
      %s34 = int_to_ptr.hbm [resolvable:$true] %s33
      %36 = dma.vmem_to_hbm [thread:$0]  %s32, 128, %s34, [#allocation4]
    $region13: #{tpu_custom_call.1} parent=1 // pred_fallthru
      _
    // Predicated region
    $region14: #{tpu_custom_call.1} parent=1 // pred_check
      _
    $region15: #{tpu_custom_call.1} parent=1 // pred_check_branch
      %38 = sbr.rel (0) target = $region17
    $region16: #{tpu_custom_call.1} parent=1 // pred_region
      %40 = dma.done [#allocation4], 128
    $region17: #{tpu_custom_call.1} parent=1 // pred_fallthru
      _
    %41 = vsyncpa [#allocation3], 1
    %42 = vsyncpa [#allocation4], 1

</llo_original>
